<compile_context>
chip_gen: v7x
topology: tpu7x:2x2x1
jax: 0.10.0
libtpu: 0.0.40
codegen_flags: <defaults>
</compile_context>

<pallas_src>
import functools
import math

import jax
import jax.numpy as jnp
from jax.experimental import pallas as pl
from jax.experimental.pallas import tpu as pltpu

H1, H2, H3 = 256, 128, 64
LANES = 128


def _round_up(v, m):
    return (v + m - 1) // m * m


def rff_pool_gcn_kernel(x_ref, w1_ref, b1_ref, w2_ref, b2_ref, w3_ref, b3_ref,
                        adj_ref, wgc_ref, bgc_ref, emb_ref, out_ref,
                        *, compute_dtype):
    """One grid step processes BB bags; GCN + sigmoid run as a last-step epilogue.

    x_ref   : (BB, N, Fp)     this step's bags (F zero-padded to Fp)
    w*/b*   : resident full weight/bias blocks (weights already in compute_dtype)
    adj_ref : (B_pad, B_pad)  zero-padded adjacency
    emb_ref : (B_pad, 128)    resident output slab (lanes >= 64 are zero)
    out_ref : (B_pad, 128)    resident output slab (sigmoid broadcast over lanes)
    """
    g = pl.program_id(0)
    bb, n, fp = x_ref.shape

    # Fused (BB*N, Fp) tile -> 3-layer ReLU MLP, f32 accumulation on the MXU.
    x = x_ref[...].reshape(bb * n, fp).astype(compute_dtype)
    h1 = jnp.maximum(
        jnp.dot(x, w1_ref[...], preferred_element_type=jnp.float32)
        + b1_ref[...], 0.0)                                       # (BB*N, 256)
    h2 = jnp.maximum(
        jnp.dot(h1.astype(compute_dtype), w2_ref[...],
                preferred_element_type=jnp.float32) + b2_ref[...], 0.0)   # (BB*N, 128)
    h3 = jnp.maximum(
        jnp.dot(h2.astype(compute_dtype), w3_ref[...],
                preferred_element_type=jnp.float32) + b3_ref[...], 0.0)   # (BB*N, 64)

    # Dropout(p=0.5) -> identity (eval mode).  Max-pool over the instance axis.
    emb_blk = jnp.max(h3.reshape(bb, n, H3), axis=1)              # (BB, 64) f32

    # Lane-dense 128-wide store into the resident embedding slab.
    row0 = pl.multiple_of(g * bb, 8)
    emb_ref[pl.ds(row0, bb), :] = jnp.concatenate(
        [emb_blk, jnp.zeros_like(emb_blk)], axis=-1)

    # GraphConvolution(64, 1) + sigmoid epilogue once all embeddings are in VMEM.
    @pl.when(g == pl.num_programs(0) - 1)
    def _():
        emb_all = emb_ref[:, :H3]                                 # (B_pad, 64)
        support = jnp.dot(emb_all, wgc_ref[...],
                          preferred_element_type=jnp.float32)     # (B_pad, 1)
        logit = jnp.dot(adj_ref[...], support,
                        preferred_element_type=jnp.float32) + bgc_ref[...]
        out_ref[...] = jnp.broadcast_to(jax.nn.sigmoid(logit), out_ref.shape)


def rff_pool_gcn_forward(x, adj, params, *, bags_per_step=None,
                         compute_dtype=jnp.bfloat16):
    """x: (B, N, F) float32, adj: (B, B) float32.
    Returns (sigmoid_out (B, 1), embedding (B, 64))."""
    B, N, F = x.shape
    w1, b1, w2, b2, w3, b3, wgc, bgc = params

    # Bag-block size: cover all bags in one step by default (maximises MXU row
    # occupancy, BB*N rows per matmul), always a multiple of 8 (sublane tiling
    # of the emb slab slices).
    if bags_per_step is None:
        BB = _round_up(B, 8)
    else:
        BB = min(_round_up(bags_per_step, 8), _round_up(B, 8))
    num_steps = pl.cdiv(B, BB)
    B_pad = num_steps * BB

    # Zero-pad F to a multiple of 128 lanes -> dense, unmasked K contraction.
    Fp = _round_up(F, 128)
    if (B_pad, Fp) != (B, F):
        x = jnp.pad(x, ((0, B_pad - B), (0, 0), (0, Fp - F)))
    if Fp != F:
        w1 = jnp.pad(w1, ((0, Fp - F), (0, 0)))
    # Zero-pad adj: padded bags' garbage embeddings contribute nothing to real rows.
    if B_pad != B:
        adj = jnp.pad(adj, ((0, B_pad - B), (0, B_pad - B)))

    # MXU operands in compute_dtype (bf16 on v6e/v7x: ~3x matmul throughput and
    # half the weight DMA bytes); accumulation stays f32 via preferred_element_type.
    w1c = w1.astype(compute_dtype)
    w2c = w2.astype(compute_dtype)
    w3c = w3.astype(compute_dtype)

    def full_spec(shape):
        nd = len(shape)
        return pl.BlockSpec(shape, lambda g, _nd=nd: (0,) * _nd)

    itemsize = jnp.dtype(compute_dtype).itemsize
    flops = (2 * B_pad * N * (Fp * H1 + H1 * H2 + H2 * H3)
             + 2 * B_pad * H3 + 2 * B_pad * B_pad)
    bytes_accessed = (B_pad * N * Fp * 4
                      + (Fp * H1 + H1 * H2 + H2 * H3) * itemsize
                      + (H1 + H2 + H3) * 4
                      + B_pad * B_pad * 4 + (H3 + 1) * 4
                      + 2 * B_pad * LANES * 4)
    cost = pl.CostEstimate(flops=flops, transcendentals=B_pad,
                           bytes_accessed=bytes_accessed)

    kernel = functools.partial(rff_pool_gcn_kernel, compute_dtype=compute_dtype)

    emb_full, out_full = pl.pallas_call(
        kernel,
        out_shape=(jax.ShapeDtypeStruct((B_pad, LANES), jnp.float32),
                   jax.ShapeDtypeStruct((B_pad, LANES), jnp.float32)),
        grid_spec=pltpu.PrefetchScalarGridSpec(
            num_scalar_prefetch=0,
            grid=(num_steps,),
            in_specs=[
                pl.BlockSpec((BB, N, Fp), lambda g: (g, 0, 0)),  # BB bags per step
                full_spec((Fp, H1)), full_spec((1, H1)),         # ll1
                full_spec((H1, H2)), full_spec((1, H2)),         # ll2
                full_spec((H2, H3)), full_spec((1, H3)),         # ll3
                full_spec((B_pad, B_pad)),                       # adj
                full_spec((H3, 1)), full_spec((1, 1)),           # gc
            ],
            out_specs=[
                pl.BlockSpec((B_pad, LANES), lambda g: (0, 0)),  # resident emb slab
                pl.BlockSpec((B_pad, LANES), lambda g: (0, 0)),  # resident out slab
            ],
        ),
        # Resident emb slab / last-step GCN epilogue carry state across steps.
        compiler_params=pltpu.CompilerParams(
            dimension_semantics=("arbitrary",)),
        cost_estimate=cost,
    )(x, w1c, b1, w2c, b2, w3c, b3, adj, wgc, bgc)

    return out_full[:B, :1], emb_full[:B, :H3]


def init_linear(key, fan_in, fan_out):
    """Deterministic init mimicking torch reset_parameters bounds.
    Returns W of shape (fan_in, fan_out) (transposed vs torch) and b (1, fan_out)."""
    kw, kb = jax.random.split(key)
    bound = 1.0 / math.sqrt(fan_in)
    w = jax.random.uniform(kw, (fan_in, fan_out), jnp.float32, -bound, bound)
    b = jax.random.uniform(kb, (1, fan_out), jnp.float32, -bound, bound)
    return w, b


def reference_forward(x, adj, params):
    """Pure-JAX reference matching the PyTorch forward (eval-mode dropout)."""
    w1, b1, w2, b2, w3, b3, wgc, bgc = params
    h1 = jax.nn.relu(jnp.einsum('bnf,fh->bnh', x, w1) + b1)
    h2 = jax.nn.relu(jnp.einsum('bnh,hk->bnk', h1, w2) + b2)
    h3 = jax.nn.relu(jnp.einsum('bnh,hk->bnk', h2, w3) + b3)
    emb = h3.max(axis=1)                                   # (B, 64)
    out = jax.nn.sigmoid(adj @ (emb @ wgc) + bgc)          # (B, 1)
    return out, emb


if __name__ == "__main__":
    IN_FEATURES = 200   # module default
    B, N = 16, 8        # 16 bags, 8 instances each

    key = jax.random.PRNGKey(0)
    kx, kadj, k1, k2, k3, kg = jax.random.split(key, 6)

    x = jax.random.normal(kx, (B, N, IN_FEATURES), jnp.float32)
    adj = jax.random.uniform(kadj, (B, B), jnp.float32)
    adj = adj / jnp.sum(adj, axis=1, keepdims=True)   # row-normalized adjacency

    w1, b1 = init_linear(k1, IN_FEATURES, H1)
    w2, b2 = init_linear(k2, H1, H2)
    w3, b3 = init_linear(k3, H2, H3)
    wgc, bgc = init_linear(kg, H3, 1)
    params = (w1, b1, w2, b2, w3, b3, wgc, bgc)

    ref_out, ref_emb = reference_forward(x, adj, params)

    # Exact-semantics check: f32 MXU operands.
    out_f32, emb_f32 = rff_pool_gcn_forward(x, adj, params,
                                            compute_dtype=jnp.float32)
    out_f32 = jax.block_until_ready(out_f32)
    emb_f32 = jax.block_until_ready(emb_f32)
    assert out_f32.shape == (B, 1) and emb_f32.shape == (B, H3)
    assert jnp.allclose(emb_f32, ref_emb, atol=1e-4, rtol=1e-4)
    assert jnp.allclose(out_f32, ref_out, atol=1e-4, rtol=1e-4)

    # Performance config: bf16 MXU operands, f32 accumulation (looser tolerance).
    out_bf, emb_bf = rff_pool_gcn_forward(x, adj, params,
                                          compute_dtype=jnp.bfloat16)
    out_bf = jax.block_until_ready(out_bf)
    emb_bf = jax.block_until_ready(emb_bf)
    assert out_bf.shape == (B, 1) and emb_bf.shape == (B, H3)
    assert jnp.allclose(emb_bf, ref_emb, atol=5e-2, rtol=5e-2)
    assert jnp.allclose(out_bf, ref_out, atol=5e-2, rtol=5e-2)

    print("KERNEL_OK")
</pallas_src>

<mosaic_0001>
module attributes {stable_mosaic.version = 11 : i64} {
  func.func @rff_pool_gcn_kernel(%arg0: i32, %arg1: memref<16x8x256xf32, #tpu.memory_space<vmem>>, %arg2: memref<256x256xf32, #tpu.memory_space<vmem>>, %arg3: memref<1x256xf32, #tpu.memory_space<vmem>>, %arg4: memref<256x128xf32, #tpu.memory_space<vmem>>, %arg5: memref<1x128xf32, #tpu.memory_space<vmem>>, %arg6: memref<128x64xf32, #tpu.memory_space<vmem>>, %arg7: memref<1x64xf32, #tpu.memory_space<vmem>>, %arg8: memref<16x16xf32, #tpu.memory_space<vmem>>, %arg9: memref<64x1xf32, #tpu.memory_space<vmem>>, %arg10: memref<1x1xf32, #tpu.memory_space<vmem>>, %arg11: memref<16x128xf32, #tpu.memory_space<vmem>>, %arg12: memref<16x128xf32, #tpu.memory_space<vmem>>) attributes {dimension_semantics = [#tpu.dimension_semantics<arbitrary>], iteration_bounds = array<i64: 1>, scalar_prefetch = 0 : i64, scratch_operands = 0 : i64, tpu.core_type = #tpu.core_type<tc>, window_params = [{transform_indices = @transform_0, window_bounds = array<i64: 16, 8, 256>}, {pipeline_mode = #tpu.pipeline_mode<synchronous>, transform_indices = @transform_1, window_bounds = array<i64: 256, 256>}, {pipeline_mode = #tpu.pipeline_mode<synchronous>, transform_indices = @transform_2, window_bounds = array<i64: 1, 256>}, {pipeline_mode = #tpu.pipeline_mode<synchronous>, transform_indices = @transform_3, window_bounds = array<i64: 256, 128>}, {pipeline_mode = #tpu.pipeline_mode<synchronous>, transform_indices = @transform_4, window_bounds = array<i64: 1, 128>}, {pipeline_mode = #tpu.pipeline_mode<synchronous>, transform_indices = @transform_5, window_bounds = array<i64: 128, 64>}, {pipeline_mode = #tpu.pipeline_mode<synchronous>, transform_indices = @transform_6, window_bounds = array<i64: 1, 64>}, {pipeline_mode = #tpu.pipeline_mode<synchronous>, transform_indices = @transform_7, window_bounds = array<i64: 16, 16>}, {pipeline_mode = #tpu.pipeline_mode<synchronous>, transform_indices = @transform_8, window_bounds = array<i64: 64, 1>}, {pipeline_mode = #tpu.pipeline_mode<synchronous>, transform_indices = @transform_9, window_bounds = array<i64: 1, 1>}, {pipeline_mode = #tpu.pipeline_mode<synchronous>, transform_indices = @transform_10, window_bounds = array<i64: 16, 128>}, {pipeline_mode = #tpu.pipeline_mode<synchronous>, transform_indices = @transform_11, window_bounds = array<i64: 16, 128>}]} {
    %c0 = arith.constant 0 : index
    %c0_0 = arith.constant 0 : index
    %c0_1 = arith.constant 0 : index
    %0 = vector.load %arg1[%c0, %c0_0, %c0_1] : memref<16x8x256xf32, #tpu.memory_space<vmem>>, vector<16x8x256xf32>
    %1 = vector.shape_cast %0 : vector<16x8x256xf32> to vector<128x256xf32>
    %c0_2 = arith.constant 0 : index
    %c0_3 = arith.constant 0 : index
    %2 = vector.load %arg2[%c0_2, %c0_3] : memref<256x256xf32, #tpu.memory_space<vmem>>, vector<256x256xf32>
    %cst = arith.constant dense<0.000000e+00> : vector<128x256xf32>
    %3 = tpu.matmul %1, %2, %cst {dimension_numbers = #tpu.dot_dimension_numbers<[1], [0], [0], [1], [0, 0, 1, 1], [], []>} : vector<128x256xf32>, vector<256x256xf32>, vector<128x256xf32> -> vector<128x256xf32>
    %c0_4 = arith.constant 0 : index
    %c0_5 = arith.constant 0 : index
    %4 = vector.load %arg3[%c0_4, %c0_5] : memref<1x256xf32, #tpu.memory_space<vmem>>, vector<1x256xf32>
    %5 = vector.broadcast %4 : vector<1x256xf32> to vector<128x256xf32>
    %6 = arith.addf %3, %5 : vector<128x256xf32>
    %cst_6 = arith.constant 0.000000e+00 : f32
    %7 = vector.broadcast %cst_6 : f32 to vector<128x256xf32>
    %8 = arith.maximumf %6, %7 : vector<128x256xf32>
    %c0_7 = arith.constant 0 : index
    %c0_8 = arith.constant 0 : index
    %9 = vector.load %arg4[%c0_7, %c0_8] : memref<256x128xf32, #tpu.memory_space<vmem>>, vector<256x128xf32>
    %cst_9 = arith.constant dense<0.000000e+00> : vector<128x128xf32>
    %10 = tpu.matmul %8, %9, %cst_9 {dimension_numbers = #tpu.dot_dimension_numbers<[1], [0], [0], [1], [0, 0, 1, 1], [], []>} : vector<128x256xf32>, vector<256x128xf32>, vector<128x128xf32> -> vector<128x128xf32>
    %c0_10 = arith.constant 0 : index
    %c0_11 = arith.constant 0 : index
    %11 = vector.load %arg5[%c0_10, %c0_11] : memref<1x128xf32, #tpu.memory_space<vmem>>, vector<1x128xf32>
    %12 = vector.broadcast %11 : vector<1x128xf32> to vector<128x128xf32>
    %13 = arith.addf %10, %12 : vector<128x128xf32>
    %cst_12 = arith.constant 0.000000e+00 : f32
    %14 = vector.broadcast %cst_12 : f32 to vector<128x128xf32>
    %15 = arith.maximumf %13, %14 : vector<128x128xf32>
    %c0_13 = arith.constant 0 : index
    %c0_14 = arith.constant 0 : index
    %16 = vector.load %arg6[%c0_13, %c0_14] : memref<128x64xf32, #tpu.memory_space<vmem>>, vector<128x64xf32>
    %cst_15 = arith.constant dense<0.000000e+00> : vector<128x64xf32>
    %17 = tpu.matmul %15, %16, %cst_15 {dimension_numbers = #tpu.dot_dimension_numbers<[1], [0], [0], [1], [0, 0, 1, 1], [], []>} : vector<128x128xf32>, vector<128x64xf32>, vector<128x64xf32> -> vector<128x64xf32>
    %c0_16 = arith.constant 0 : index
    %c0_17 = arith.constant 0 : index
    %18 = vector.load %arg7[%c0_16, %c0_17] : memref<1x64xf32, #tpu.memory_space<vmem>>, vector<1x64xf32>
    %19 = vector.broadcast %18 : vector<1x64xf32> to vector<128x64xf32>
    %20 = arith.addf %17, %19 : vector<128x64xf32>
    %cst_18 = arith.constant 0.000000e+00 : f32
    %21 = vector.broadcast %cst_18 : f32 to vector<128x64xf32>
    %22 = arith.maximumf %20, %21 : vector<128x64xf32>
    %23 = vector.shape_cast %22 : vector<128x64xf32> to vector<16x8x64xf32>
    %cst_19 = arith.constant dense<0xFF800000> : vector<16x64xf32>
    %24 = vector.multi_reduction <maximumf>, %23, %cst_19 [1] : vector<16x8x64xf32> to vector<16x64xf32>
    %c16_i32 = arith.constant 16 : i32
    %25 = arith.muli %arg0, %c16_i32 : i32
    %26 = tpu.assume_multiple %25, 8 : i32
    %cst_20 = arith.constant 0.000000e+00 : f32
    %27 = vector.broadcast %cst_20 : f32 to vector<16x64xf32>
    %28 = tpu.concatenate %24, %27 in 1 : vector<16x64xf32>, vector<16x64xf32> -> vector<16x128xf32>
    %29 = arith.index_cast %26 : i32 to index
    %c0_21 = arith.constant 0 : index
    %30 = vector.load %arg11[%29, %c0_21] : memref<16x128xf32, #tpu.memory_space<vmem>>, vector<16x128xf32>
    tpu.vector_store %arg11[%29, %c0_21], %28 {strides = array<i32>} : memref<16x128xf32, #tpu.memory_space<vmem>>, vector<16x128xf32>,
    %c0_i32 = arith.constant 0 : i32
    %31 = arith.cmpi eq, %arg0, %c0_i32 : i32
    %32 = arith.extui %31 : i1 to i32
    %c0_i32_22 = arith.constant 0 : i32
    %33 = arith.cmpi ne, %32, %c0_i32_22 : i32
    scf.if %33 {
      %c0_23 = arith.constant 0 : index
      %c0_24 = arith.constant 0 : index
      %34 = vector.load %arg11[%c0_23, %c0_24] : memref<16x128xf32, #tpu.memory_space<vmem>>, vector<16x64xf32>
      %c0_25 = arith.constant 0 : index
      %c0_26 = arith.constant 0 : index
      %35 = vector.load %arg9[%c0_25, %c0_26] : memref<64x1xf32, #tpu.memory_space<vmem>>, vector<64x1xf32>
      %cst_27 = arith.constant dense<0.000000e+00> : vector<16x1xf32>
      %36 = tpu.matmul %34, %35, %cst_27 {dimension_numbers = #tpu.dot_dimension_numbers<[1], [0], [0], [1], [0, 0, 1, 1], [], []>} : vector<16x64xf32>, vector<64x1xf32>, vector<16x1xf32> -> vector<16x1xf32>
      %c0_28 = arith.constant 0 : index
      %c0_29 = arith.constant 0 : index
      %37 = vector.load %arg8[%c0_28, %c0_29] : memref<16x16xf32, #tpu.memory_space<vmem>>, vector<16x16xf32>
      %cst_30 = arith.constant dense<0.000000e+00> : vector<16x1xf32>
      %38 = tpu.matmul %37, %36, %cst_30 {dimension_numbers = #tpu.dot_dimension_numbers<[1], [0], [0], [1], [0, 0, 1, 1], [], []>} : vector<16x16xf32>, vector<16x1xf32>, vector<16x1xf32> -> vector<16x1xf32>
      %c0_31 = arith.constant 0 : index
      %c0_32 = arith.constant 0 : index
      %39 = vector.load %arg10[%c0_31, %c0_32] : memref<1x1xf32, #tpu.memory_space<vmem>>, vector<1x1xf32>
      %40 = vector.broadcast %39 : vector<1x1xf32> to vector<16x1xf32>
      %41 = arith.addf %38, %40 : vector<16x1xf32>
      %42 = arith.negf %41 : vector<16x1xf32>
      %43 = math.exp %42 : vector<16x1xf32>
      %cst_33 = arith.constant 1.000000e+00 : f32
      %44 = vector.broadcast %cst_33 : f32 to vector<16x1xf32>
      %45 = arith.addf %44, %43 : vector<16x1xf32>
      %46 = arith.divf %44, %45 : vector<16x1xf32>
      %47 = vector.shape_cast %46 : vector<16x1xf32> to vector<16x1xf32>
      %48 = vector.broadcast %47 : vector<16x1xf32> to vector<16x128xf32>
      %c0_34 = arith.constant 0 : index
      %c0_35 = arith.constant 0 : index
      %49 = vector.load %arg12[%c0_34, %c0_35] : memref<16x128xf32, #tpu.memory_space<vmem>>, vector<16x128xf32>
      tpu.vector_store %arg12[%c0_34, %c0_35], %48 {strides = array<i32>} : memref<16x128xf32, #tpu.memory_space<vmem>>, vector<16x128xf32>,
    } else {
    }
    return
  }
  func.func @transform_0(%arg0: i32) -> (i32, i32, i32) {
    %c0_i32 = arith.constant 0 : i32
    %c0_i32_0 = arith.constant 0 : i32
    %c0_i32_1 = arith.constant 0 : i32
    return %arg0, %c0_i32, %c0_i32_0 : i32, i32, i32
  }
  func.func @transform_1(%arg0: i32) -> (i32, i32) {
    %c0_i32 = arith.constant 0 : i32
    %c0_i32_0 = arith.constant 0 : i32
    %c0_i32_1 = arith.constant 0 : i32
    return %c0_i32, %c0_i32_0 : i32, i32
  }
  func.func @transform_2(%arg0: i32) -> (i32, i32) {
    %c0_i32 = arith.constant 0 : i32
    %c0_i32_0 = arith.constant 0 : i32
    %c0_i32_1 = arith.constant 0 : i32
    return %c0_i32, %c0_i32_0 : i32, i32
  }
  func.func @transform_3(%arg0: i32) -> (i32, i32) {
    %c0_i32 = arith.constant 0 : i32
    %c0_i32_0 = arith.constant 0 : i32
    %c0_i32_1 = arith.constant 0 : i32
    return %c0_i32, %c0_i32_0 : i32, i32
  }
  func.func @transform_4(%arg0: i32) -> (i32, i32) {
    %c0_i32 = arith.constant 0 : i32
    %c0_i32_0 = arith.constant 0 : i32
    %c0_i32_1 = arith.constant 0 : i32
    return %c0_i32, %c0_i32_0 : i32, i32
  }
  func.func @transform_5(%arg0: i32) -> (i32, i32) {
    %c0_i32 = arith.constant 0 : i32
    %c0_i32_0 = arith.constant 0 : i32
    %c0_i32_1 = arith.constant 0 : i32
    return %c0_i32, %c0_i32_0 : i32, i32
  }
  func.func @transform_6(%arg0: i32) -> (i32, i32) {
    %c0_i32 = arith.constant 0 : i32
    %c0_i32_0 = arith.constant 0 : i32
    %c0_i32_1 = arith.constant 0 : i32
    return %c0_i32, %c0_i32_0 : i32, i32
  }
  func.func @transform_7(%arg0: i32) -> (i32, i32) {
    %c0_i32 = arith.constant 0 : i32
    %c0_i32_0 = arith.constant 0 : i32
    %c0_i32_1 = arith.constant 0 : i32
    return %c0_i32, %c0_i32_0 : i32, i32
  }
  func.func @transform_8(%arg0: i32) -> (i32, i32) {
    %c0_i32 = arith.constant 0 : i32
    %c0_i32_0 = arith.constant 0 : i32
    %c0_i32_1 = arith.constant 0 : i32
    return %c0_i32, %c0_i32_0 : i32, i32
  }
  func.func @transform_9(%arg0: i32) -> (i32, i32) {
    %c0_i32 = arith.constant 0 : i32
    %c0_i32_0 = arith.constant 0 : i32
    %c0_i32_1 = arith.constant 0 : i32
    return %c0_i32, %c0_i32_0 : i32, i32
  }
  func.func @transform_10(%arg0: i32) -> (i32, i32) {
    %c0_i32 = arith.constant 0 : i32
    %c0_i32_0 = arith.constant 0 : i32
    %c0_i32_1 = arith.constant 0 : i32
    return %c0_i32, %c0_i32_0 : i32, i32
  }
  func.func @transform_11(%arg0: i32) -> (i32, i32) {
    %c0_i32 = arith.constant 0 : i32
    %c0_i32_0 = arith.constant 0 : i32
    %c0_i32_1 = arith.constant 0 : i32
    return %c0_i32, %c0_i32_0 : i32, i32
  }
}

</mosaic_0001>

<llo_original>
// kernel: tpu_custom_call.1
$region0: #{tpu_custom_call.1}
  #allocation0 [shape = 'u32[]', space=smem, size = 0x4, offset = 0x4, fixed_abs, tag = 'smem constant byte address 0x4 - core index']
  #allocation1 [shape = 'u32[144,128]{1,0:T(1,128)}', space=vmem, size = 0x12000, scoped, tag = 'internal scratch']
  #allocation2 [shape = 'f32[1,1]{1,0:T(1,128)S(1)}', space=vmem, size = 0x200, scoped, tag = 'scoped memory for tpu_custom_call.1']
  %s0 = inlined_call_operand.vmem [shape: f32[16,8,256], index: 0, kind: input, shape index: {}]
  %s1 = inlined_call_operand.hbm [shape: f32[256,256], index: 1, kind: input, shape index: {}]
  %s2 = inlined_call_operand.hbm [shape: f32[1,256], index: 2, kind: input, shape index: {}]
  %s3 = inlined_call_operand.hbm [shape: f32[256,128], index: 3, kind: input, shape index: {}]
  %s4 = inlined_call_operand.vmem [shape: f32[1,128], index: 4, kind: input, shape index: {}]
  %s5 = inlined_call_operand.vmem [shape: f32[128,64], index: 5, kind: input, shape index: {}]
  %s6 = inlined_call_operand.vmem [shape: f32[1,64], index: 6, kind: input, shape index: {}]
  %s7 = inlined_call_operand.vmem [shape: f32[16,16], index: 7, kind: input, shape index: {}]
  %s8 = inlined_call_operand.vmem [shape: f32[64,1], index: 8, kind: input, shape index: {}]
  %s9 = inlined_call_operand.<no memory space> [shape: f32[1,1], index: 9, kind: input, shape index: {}]
  %s10 = inlined_call_operand.hbm [shape: f32[16,128], index: 10, kind: output, shape index: {0}]
  %s11 = inlined_call_operand.hbm [shape: f32[16,128], index: 11, kind: output, shape index: {1}]
  %12 = xla_tuple %s10, %s11
  %s13 = sld [smem:[#allocation0]]
  $region74: #{tpu_custom_call.1} parent=0
    _
  %s15 = ssub.s32 1, %s13
  %s16 = scalar_select 0, %s15, %s13
  %v17 = vstv %s9
  %18 = vst [vmem:[#allocation2] sm:$0x1] %v17
  $region1: #{tpu_custom_call.1} parent=0
    #allocation3 [shape = 'u8[262144]{0}', space=vmem, size = 0x40000, scoped, tag = 'input window, operand 1, single buffered']
    #allocation4 [shape = 's32[1]{0}', space=sflag, size = 0x4, scoped, tag = 'scoped memory for tpu_custom_call.1']
    #allocation5 [shape = 's32[1]{0}', space=sflag, size = 0x4, scoped, tag = 'scoped memory for tpu_custom_call.1']
    #allocation6 [shape = 'u8[1024]{0}', space=vmem, size = 0x400, scoped, tag = 'input window, operand 2, single buffered']
    #allocation7 [shape = 's32[1]{0}', space=sflag, size = 0x4, scoped, tag = 'scoped memory for tpu_custom_call.1']
    #allocation8 [shape = 'u8[131072]{0}', space=vmem, size = 0x20000, scoped, tag = 'input window, operand 3, single buffered']
    #allocation9 [shape = 'u8[8192]{0}', space=vmem, size = 0x2000, scoped, tag = 'output window, operand 0, single buffered']
    #allocation10 [shape = 'u8[8192]{0}', space=vmem, size = 0x2000, scoped, tag = 'output window, operand 1, single buffered']
    #allocation11 [shape = 's32[1]{0}', space=sflag, size = 0x4, scoped, tag = 'scoped memory for tpu_custom_call.1']
    %19 = vsyncpa [#allocation4], 0
    %20 = vsyncpa [#allocation7], 0
    %21 = vsyncpa [#allocation5], 0
    %22 = vsyncpa [#allocation11], 0
    // Predicated region
    $region2: #{tpu_custom_call.1} parent=1 // pred_check
      _
    $region3: #{tpu_custom_call.1} parent=1 // pred_check_branch
      %24 = sbr.rel (0) target = $region5
    $region4: #{tpu_custom_call.1} parent=1 // pred_region
      _
    $region5: #{tpu_custom_call.1} parent=1 // pred_fallthru
      _
    // Predicated region
    $region6: #{tpu_custom_call.1} parent=1 // pred_check
      _
    $region7: #{tpu_custom_call.1} parent=1 // pred_check_branch
      %26 = sbr.rel (0) target = $region9
    $region8: #{tpu_custom_call.1} parent=1 // pred_region
      %s28 = ssub.s32 8192, 8192
      %29 = vsyncadd [#allocation4], %s28
      %s30 = sshll.u32 [#allocation3], 4
      %s31 = int_to_ptr.vmem [resolvable:$true] %s30
      %36 = dma.hbm_to_vmem [thread:$0]  %s1, 8192, %s31, [#allocation4], 256, 256, 16
    $region9: #{tpu_custom_call.1} parent=1 // pred_fallthru
      _
    // Predicated region
    $region10: #{tpu_custom_call.1} parent=1 // pred_check
      _
    $region11: #{tpu_custom_call.1} parent=1 // pred_check_branch
      %38 = sbr.rel (0) target = $region13
    $region12: #{tpu_custom_call.1} parent=1 // pred_region
      %s40 = ssub.s32 32, 32
      %41 = vsyncadd [#allocation7], %s40
      %s43 = sshll.u32 [#allocation6], 4
      %s44 = int_to_ptr.vmem [resolvable:$true] %s43
      %46 = dma.hbm_to_vmem [thread:$0]  %s2, 32, %s44, [#allocation7]
    $region13: #{tpu_custom_call.1} parent=1 // pred_fallthru
      _
    // Predicated region
    $region14: #{tpu_custom_call.1} parent=1 // pred_check
      _
    $region15: #{tpu_custom_call.1} parent=1 // pred_check_branch
      %48 = sbr.rel (0) target = $region17
    $region16: #{tpu_custom_call.1} parent=1 // pred_region
      %s50 = ssub.s32 4096, 4096
      %51 = vsyncadd [#allocation7], %s50
      %s52 = sshll.u32 [#allocation8], 4
      %s53 = int_to_ptr.vmem [resolvable:$true] %s52
      %58 = dma.hbm_to_vmem [thread:$0]  %s3, 4096, %s53, [#allocation7], 128, 128, 8
    $region17: #{tpu_custom_call.1} parent=1 // pred_fallthru
      _
    // Predicated region
    $region18: #{tpu_custom_call.1} parent=1 // pred_check
      _
    $region19: #{tpu_custom_call.1} parent=1 // pred_check_branch
      %60 = sbr.rel (0) target = $region21
    $region20: #{tpu_custom_call.1} parent=1 // pred_region
      _
    $region21: #{tpu_custom_call.1} parent=1 // pred_fallthru
      _
    // Predicated region
    $region22: #{tpu_custom_call.1} parent=1 // pred_check
      _
    $region23: #{tpu_custom_call.1} parent=1 // pred_check_branch
      %62 = sbr.rel (0) target = $region25
    $region24: #{tpu_custom_call.1} parent=1 // pred_region
      _
    $region25: #{tpu_custom_call.1} parent=1 // pred_fallthru
      _
    // Predicated region
    $region26: #{tpu_custom_call.1} parent=1 // pred_check
      _
    $region27: #{tpu_custom_call.1} parent=1 // pred_check_branch
      %64 = sbr.rel (0) target = $region29
    $region28: #{tpu_custom_call.1} parent=1 // pred_region
      _
    $region29: #{tpu_custom_call.1} parent=1 // pred_fallthru
      _
    // Predicated region
    $region30: #{tpu_custom_call.1} parent=1 // pred_check
      _
    $region31: #{tpu_custom_call.1} parent=1 // pred_check_branch
      %66 = sbr.rel (0) target = $region33
    $region32: #{tpu_custom_call.1} parent=1 // pred_region
      _
    $region33: #{tpu_custom_call.1} parent=1 // pred_fallthru
      _
    // Predicated region
    $region34: #{tpu_custom_call.1} parent=1 // pred_check
      _
    $region35: #{tpu_custom_call.1} parent=1 // pred_check_branch
      %68 = sbr.rel (0) target = $region37
    $region36: #{tpu_custom_call.1} parent=1 // pred_region
      _
    $region37: #{tpu_custom_call.1} parent=1 // pred_fallthru
      _
    // Predicated region
    $region38: #{tpu_custom_call.1} parent=1 // pred_check
      _
    $region39: #{tpu_custom_call.1} parent=1 // pred_check_branch
      %70 = sbr.rel (0) target = $region41
    $region40: #{tpu_custom_call.1} parent=1 // pred_region
      _
    $region41: #{tpu_custom_call.1} parent=1 // pred_fallthru
      _
    // Predicated region
    $region42: #{tpu_custom_call.1} parent=1 // pred_check
      _
    $region43: #{tpu_custom_call.1} parent=1 // pred_check_branch
      %72 = sbr.rel (0) target = $region45
    $region44: #{tpu_custom_call.1} parent=1 // pred_region
      %73 = dma.done [#allocation4], 8192
    $region45: #{tpu_custom_call.1} parent=1 // pred_fallthru
      _
    // Predicated region
    $region46: #{tpu_custom_call.1} parent=1 // pred_check
      _
    $region47: #{tpu_custom_call.1} parent=1 // pred_check_branch
      %75 = sbr.rel (0) target = $region49
    $region48: #{tpu_custom_call.1} parent=1 // pred_region
      %76 = dma.done [#allocation7], 32
    $region49: #{tpu_custom_call.1} parent=1 // pred_fallthru
      _
    // Predicated region
    $region50: #{tpu_custom_call.1} parent=1 // pred_check
      _
    $region51: #{tpu_custom_call.1} parent=1 // pred_check_branch
      %78 = sbr.rel (0) target = $region53
    $region52: #{tpu_custom_call.1} parent=1 // pred_region
      %79 = dma.done [#allocation7], 4096
    $region53: #{tpu_custom_call.1} parent=1 // pred_fallthru
      _
    %v80 = vld [vmem:[%s0] sm:$0xff]
    %v81 = vld [vmem:[%s0 + $0x8] sm:$0xff]
    %v82 = vld [vmem:[%s0 + $0x10] sm:$0xff]
    %v83 = vld [vmem:[%s0 + $0x18] sm:$0xff]
    %v84 = vld [vmem:[%s0 + $0x20] sm:$0xff]
    %v85 = vld [vmem:[%s0 + $0x28] sm:$0xff]
    %v86 = vld [vmem:[%s0 + $0x30] sm:$0xff]
    %v87 = vld [vmem:[%s0 + $0x38] sm:$0xff]
    %v88 = vld [vmem:[%s0 + $0x40] sm:$0xff]
    %v89 = vld [vmem:[%s0 + $0x48] sm:$0xff]
    %v90 = vld [vmem:[%s0 + $0x50] sm:$0xff]
    %v91 = vld [vmem:[%s0 + $0x58] sm:$0xff]
    %v92 = vld [vmem:[%s0 + $0x60] sm:$0xff]
    %v93 = vld [vmem:[%s0 + $0x68] sm:$0xff]
    %v94 = vld [vmem:[%s0 + $0x70] sm:$0xff]
    %v95 = vld [vmem:[%s0 + $0x78] sm:$0xff]
    %v96 = vld [vmem:[%s0 + $0x80] sm:$0xff]
    %v97 = vld [vmem:[%s0 + $0x88] sm:$0xff]
    %v98 = vld [vmem:[%s0 + $0x90] sm:$0xff]
    %v99 = vld [vmem:[%s0 + $0x98] sm:$0xff]
    %v100 = vld [vmem:[%s0 + $0xa0] sm:$0xff]
    %v101 = vld [vmem:[%s0 + $0xa8] sm:$0xff]
    %v102 = vld [vmem:[%s0 + $0xb0] sm:$0xff]
    %v103 = vld [vmem:[%s0 + $0xb8] sm:$0xff]
    %v104 = vld [vmem:[%s0 + $0xc0] sm:$0xff]
    %v105 = vld [vmem:[%s0 + $0xc8] sm:$0xff]
    %v106 = vld [vmem:[%s0 + $0xd0] sm:$0xff]
    %v107 = vld [vmem:[%s0 + $0xd8] sm:$0xff]
    %v108 = vld [vmem:[%s0 + $0xe0] sm:$0xff]
    %v109 = vld [vmem:[%s0 + $0xe8] sm:$0xff]
    %v110 = vld [vmem:[%s0 + $0xf0] sm:$0xff]
    %v111 = vld [vmem:[%s0 + $0xf8] sm:$0xff]
    %v112 = vld [vmem:[#allocation3] sm:$0xff]
    %v113 = vld [vmem:[#allocation3 + $0x8] sm:$0xff]
    %v114 = vld [vmem:[#allocation3 + $0x10] sm:$0xff]
    %v115 = vld [vmem:[#allocation3 + $0x18] sm:$0xff]
    %v116 = vld [vmem:[#allocation3 + $0x20] sm:$0xff]
    %v117 = vld [vmem:[#allocation3 + $0x28] sm:$0xff]
    %v118 = vld [vmem:[#allocation3 + $0x30] sm:$0xff]
    %v119 = vld [vmem:[#allocation3 + $0x38] sm:$0xff]
    %v120 = vld [vmem:[#allocation3 + $0x40] sm:$0xff]
    %v121 = vld [vmem:[#allocation3 + $0x48] sm:$0xff]
    %v122 = vld [vmem:[#allocation3 + $0x50] sm:$0xff]
    %v123 = vld [vmem:[#allocation3 + $0x58] sm:$0xff]
    %v124 = vld [vmem:[#allocation3 + $0x60] sm:$0xff]
    %v125 = vld [vmem:[#allocation3 + $0x68] sm:$0xff]
    %v126 = vld [vmem:[#allocation3 + $0x70] sm:$0xff]
    %v127 = vld [vmem:[#allocation3 + $0x78] sm:$0xff]
    %v128 = vld [vmem:[#allocation3 + $0x80] sm:$0xff]
    %v129 = vld [vmem:[#allocation3 + $0x88] sm:$0xff]
    %v130 = vld [vmem:[#allocation3 + $0x90] sm:$0xff]
    %v131 = vld [vmem:[#allocation3 + $0x98] sm:$0xff]
    %v132 = vld [vmem:[#allocation3 + $0xa0] sm:$0xff]
    %v133 = vld [vmem:[#allocation3 + $0xa8] sm:$0xff]
    %v134 = vld [vmem:[#allocation3 + $0xb0] sm:$0xff]
    %v135 = vld [vmem:[#allocation3 + $0xb8] sm:$0xff]
    %v136 = vld [vmem:[#allocation3 + $0xc0] sm:$0xff]
    %v137 = vld [vmem:[#allocation3 + $0xc8] sm:$0xff]
    %v138 = vld [vmem:[#allocation3 + $0xd0] sm:$0xff]
    %v139 = vld [vmem:[#allocation3 + $0xd8] sm:$0xff]
    %v140 = vld [vmem:[#allocation3 + $0xe0] sm:$0xff]
    %v141 = vld [vmem:[#allocation3 + $0xe8] sm:$0xff]
    %v142 = vld [vmem:[#allocation3 + $0xf0] sm:$0xff]
    %v143 = vld [vmem:[#allocation3 + $0xf8] sm:$0xff]
    %v144 = vld [vmem:[#allocation3 + $0x100] sm:$0xff]
    %v145 = vld [vmem:[#allocation3 + $0x108] sm:$0xff]
    %v146 = vld [vmem:[#allocation3 + $0x110] sm:$0xff]
    %v147 = vld [vmem:[#allocation3 + $0x118] sm:$0xff]
    %v148 = vld [vmem:[#allocation3 + $0x120] sm:$0xff]
    %v149 = vld [vmem:[#allocation3 + $0x128] sm:$0xff]
    %v150 = vld [vmem:[#allocation3 + $0x130] sm:$0xff]
    %v151 = vld [vmem:[#allocation3 + $0x138] sm:$0xff]
    %v152 = vld [vmem:[#allocation3 + $0x140] sm:$0xff]
    %v153 = vld [vmem:[#allocation3 + $0x148] sm:$0xff]
    %v154 = vld [vmem:[#allocation3 + $0x150] sm:$0xff]
    %v155 = vld [vmem:[#allocation3 + $0x158] sm:$0xff]
    %v156 = vld [vmem:[#allocation3 + $0x160] sm:$0xff]
    %v157 = vld [vmem:[#allocation3 + $0x168] sm:$0xff]
    %v158 = vld [vmem:[#allocation3 + $0x170] sm:$0xff]
    %v159 = vld [vmem:[#allocation3 + $0x178] sm:$0xff]
    %v160 = vld [vmem:[#allocation3 + $0x180] sm:$0xff]
    %v161 = vld [vmem:[#allocation3 + $0x188] sm:$0xff]
    %v162 = vld [vmem:[#allocation3 + $0x190] sm:$0xff]
    %v163 = vld [vmem:[#allocation3 + $0x198] sm:$0xff]
    %v164 = vld [vmem:[#allocation3 + $0x1a0] sm:$0xff]
    %v165 = vld [vmem:[#allocation3 + $0x1a8] sm:$0xff]
    %v166 = vld [vmem:[#allocation3 + $0x1b0] sm:$0xff]
    %v167 = vld [vmem:[#allocation3 + $0x1b8] sm:$0xff]
    %v168 = vld [vmem:[#allocation3 + $0x1c0] sm:$0xff]
    %v169 = vld [vmem:[#allocation3 + $0x1c8] sm:$0xff]
    %v170 = vld [vmem:[#allocation3 + $0x1d0] sm:$0xff]
    %v171 = vld [vmem:[#allocation3 + $0x1d8] sm:$0xff]
    %v172 = vld [vmem:[#allocation3 + $0x1e0] sm:$0xff]
    %v173 = vld [vmem:[#allocation3 + $0x1e8] sm:$0xff]
    %v174 = vld [vmem:[#allocation3 + $0x1f0] sm:$0xff]
    %v175 = vld [vmem:[#allocation3 + $0x1f8] sm:$0xff]
    %v176 = vld [vmem:[#allocation6] sm:$0x3]
    %v178 = vlaneseq
    %v179 = vshrl.u32 %v178, 7
    %v180 = vsub.s32 0, %v179
    %v181 = vrot.slane %v176, %v180
    %v182 = vlaneseq
    %v183 = vshrl.u32 %v182, 7
    %v184 = vsub.s32 1, %v183
    %v185 = vrot.slane %v176, %v184
    %188 = vmatprep.subr.mxu0 %v113
    %189 = vmatpush1.msra.mxu0 %v112
    %190 = vmatprep.subr.mxu0 %v115
    %191 = vmatpush1.msra.mxu0 %v114
    %192 = vmatprep.subr.mxu0 %v117
    %193 = vmatpush1.msra.mxu0 %v116
    %194 = vmatprep.subr.mxu0 %v119
    %195 = vmatpush1.msra.mxu0 %v118
    %196 = vmatprep.subr.mxu0 %v121
    %197 = vmatpush1.msra.mxu0 %v120
    %198 = vmatprep.subr.mxu0 %v123
    %199 = vmatpush1.msra.mxu0 %v122
    %200 = vmatprep.subr.mxu0 %v125
    %201 = vmatpush1.msra.mxu0 %v124
    %202 = vmatprep.subr.mxu0 %v127
    %203 = vmatpush1.msra.mxu0 %v126
    %204 = vmatprep.subr.mxu0 %v129
    %205 = vmatpush1.msra.mxu0 %v128
    %206 = vmatprep.subr.mxu0 %v131
    %207 = vmatpush1.msra.mxu0 %v130
    %208 = vmatprep.subr.mxu0 %v133
    %209 = vmatpush1.msra.mxu0 %v132
    %210 = vmatprep.subr.mxu0 %v135
    %211 = vmatpush1.msra.mxu0 %v134
    %212 = vmatprep.subr.mxu0 %v137
    %213 = vmatpush1.msra.mxu0 %v136
    %214 = vmatprep.subr.mxu0 %v139
    %215 = vmatpush1.msra.mxu0 %v138
    %216 = vmatprep.subr.mxu0 %v141
    %217 = vmatpush1.msra.mxu0 %v140
    %218 = vmatprep.subr.mxu0 %v143
    %219 = vmatpush1.msra.mxu0 %v142
    %220 = vmatprep.subr.mxu0 %v145
    %221 = vmatpush1.msra.mxu0 %v144
    %222 = vmatprep.subr.mxu0 %v147
    %223 = vmatpush1.msra.mxu0 %v146
    %224 = vmatprep.subr.mxu0 %v149
    %225 = vmatpush1.msra.mxu0 %v148
    %226 = vmatprep.subr.mxu0 %v151
    %227 = vmatpush1.msra.mxu0 %v150
    %228 = vmatprep.subr.mxu0 %v153
    %229 = vmatpush1.msra.mxu0 %v152
    %230 = vmatprep.subr.mxu0 %v155
    %231 = vmatpush1.msra.mxu0 %v154
    %232 = vmatprep.subr.mxu0 %v157
    %233 = vmatpush1.msra.mxu0 %v156
    %234 = vmatprep.subr.mxu0 %v159
    %235 = vmatpush1.msra.mxu0 %v158
    %236 = vmatprep.subr.mxu0 %v161
    %237 = vmatpush1.msra.mxu0 %v160
    %238 = vmatprep.subr.mxu0 %v163
    %239 = vmatpush1.msra.mxu0 %v162
    %240 = vmatprep.subr.mxu0 %v165
    %241 = vmatpush1.msra.mxu0 %v164
    %242 = vmatprep.subr.mxu0 %v167
    %243 = vmatpush1.msra.mxu0 %v166
    %244 = vmatprep.subr.mxu0 %v169
    %245 = vmatpush1.msra.mxu0 %v168
    %246 = vmatprep.subr.mxu0 %v171
    %247 = vmatpush1.msra.mxu0 %v170
    %248 = vmatprep.subr.mxu0 %v173
    %249 = vmatpush1.msra.mxu0 %v172
    %250 = vmatprep.subr.mxu0 %v175
    %251 = vmatpush1.msra.mxu0 %v174
    %252 = vmatprep.mubr.f32.mxu0 %v81
    %253 = vmatmul.mubr.f32.gmra.mrb[0].mxu0 %v80
    %v254 = vpop.f32.mrb[0].mxu0
    %v255 = vadd.f32 %v181, %v254
    %v256 = vpop.f32.mrb[0].mxu0
    %v257 = vadd.f32 %v185, %v256
    %258 = vmatprep.mubr.f32.mxu0 %v83
    %259 = vmatmul.mubr.f32.gmra.mrb[0].mxu0 %v82
    %v260 = vpop.f32.mrb[0].mxu0
    %v261 = vadd.f32 %v181, %v260
    %v262 = vpop.f32.mrb[0].mxu0
    %v263 = vadd.f32 %v185, %v262
    %264 = vmatprep.mubr.f32.mxu0 %v85
    %265 = vmatmul.mubr.f32.gmra.mrb[0].mxu0 %v84
    %v266 = vpop.f32.mrb[0].mxu0
    %v267 = vadd.f32 %v181, %v266
    %v268 = vpop.f32.mrb[0].mxu0
    %v269 = vadd.f32 %v185, %v268
    %270 = vmatprep.mubr.f32.mxu0 %v87
    %271 = vmatmul.mubr.f32.gmra.mrb[0].mxu0 %v86
    %v272 = vpop.f32.mrb[0].mxu0
    %v273 = vadd.f32 %v181, %v272
    %v274 = vpop.f32.mrb[0].mxu0
    %v275 = vadd.f32 %v185, %v274
    %276 = vmatprep.mubr.f32.mxu0 %v89
    %277 = vmatmul.mubr.f32.gmra.mrb[0].mxu0 %v88
    %v278 = vpop.f32.mrb[0].mxu0
    %v279 = vadd.f32 %v181, %v278
    %v280 = vpop.f32.mrb[0].mxu0
    %v281 = vadd.f32 %v185, %v280
    %282 = vmatprep.mubr.f32.mxu0 %v91
    %283 = vmatmul.mubr.f32.gmra.mrb[0].mxu0 %v90
    %v284 = vpop.f32.mrb[0].mxu0
    %v285 = vadd.f32 %v181, %v284
    %v286 = vpop.f32.mrb[0].mxu0
    %v287 = vadd.f32 %v185, %v286
    %288 = vmatprep.mubr.f32.mxu0 %v93
    %289 = vmatmul.mubr.f32.gmra.mrb[0].mxu0 %v92
    %v290 = vpop.f32.mrb[0].mxu0
    %v291 = vadd.f32 %v181, %v290
    %v292 = vpop.f32.mrb[0].mxu0
    %v293 = vadd.f32 %v185, %v292
    %294 = vmatprep.mubr.f32.mxu0 %v95
    %295 = vmatmul.mubr.f32.gmra.mrb[0].mxu0 %v94
    %v296 = vpop.f32.mrb[0].mxu0
    %v297 = vadd.f32 %v181, %v296
    %v298 = vpop.f32.mrb[0].mxu0
    %v299 = vadd.f32 %v185, %v298
    %300 = vmatprep.mubr.f32.mxu0 %v97
    %301 = vmatmul.mubr.f32.gmra.mrb[0].mxu0 %v96
    %v302 = vpop.f32.mrb[0].mxu0
    %v303 = vadd.f32 %v181, %v302
    %v304 = vpop.f32.mrb[0].mxu0
    %v305 = vadd.f32 %v185, %v304
    %306 = vmatprep.mubr.f32.mxu0 %v99
    %307 = vmatmul.mubr.f32.gmra.mrb[0].mxu0 %v98
    %v308 = vpop.f32.mrb[0].mxu0
    %v309 = vadd.f32 %v181, %v308
    %v310 = vpop.f32.mrb[0].mxu0
    %v311 = vadd.f32 %v185, %v310
    %312 = vmatprep.mubr.f32.mxu0 %v101
    %313 = vmatmul.mubr.f32.gmra.mrb[0].mxu0 %v100
    %v314 = vpop.f32.mrb[0].mxu0
    %v315 = vadd.f32 %v181, %v314
    %v316 = vpop.f32.mrb[0].mxu0
    %v317 = vadd.f32 %v185, %v316
    %318 = vmatprep.mubr.f32.mxu0 %v103
    %319 = vmatmul.mubr.f32.gmra.mrb[0].mxu0 %v102
    %v320 = vpop.f32.mrb[0].mxu0
    %v321 = vadd.f32 %v181, %v320
    %v322 = vpop.f32.mrb[0].mxu0
    %v323 = vadd.f32 %v185, %v322
    %324 = vmatprep.mubr.f32.mxu0 %v105
    %325 = vmatmul.mubr.f32.gmra.mrb[0].mxu0 %v104
    %v326 = vpop.f32.mrb[0].mxu0
    %v327 = vadd.f32 %v181, %v326
    %v328 = vpop.f32.mrb[0].mxu0
    %v329 = vadd.f32 %v185, %v328
    %330 = vmatprep.mubr.f32.mxu0 %v107
    %331 = vmatmul.mubr.f32.gmra.mrb[0].mxu0 %v106
    %v332 = vpop.f32.mrb[0].mxu0
    %v333 = vadd.f32 %v181, %v332
    %v334 = vpop.f32.mrb[0].mxu0
    %v335 = vadd.f32 %v185, %v334
    %336 = vmatprep.mubr.f32.mxu0 %v109
    %337 = vmatmul.mubr.f32.gmra.mrb[0].mxu0 %v108
    %v338 = vpop.f32.mrb[0].mxu0
    %v339 = vadd.f32 %v181, %v338
    %v340 = vpop.f32.mrb[0].mxu0
    %v341 = vadd.f32 %v185, %v340
    %342 = vmatprep.mubr.f32.mxu0 %v111
    %343 = vmatmul.mubr.f32.gmra.mrb[0].mxu0 %v110
    %v344 = vpop.f32.mrb[0].mxu0
    %v345 = vadd.f32 %v181, %v344
    %v346 = vpop.f32.mrb[0].mxu0
    %v347 = vadd.f32 %v185, %v346
    %348 = vdwg.mxu0
    %v349 = vmax.f32 %v255, 0.0
    %v350 = vmax.f32 %v257, 0.0
    %v351 = vmax.f32 %v261, 0.0
    %v352 = vmax.f32 %v263, 0.0
    %v353 = vmax.f32 %v267, 0.0
    %v354 = vmax.f32 %v269, 0.0
    %v355 = vmax.f32 %v273, 0.0
    %v356 = vmax.f32 %v275, 0.0
    %v357 = vmax.f32 %v279, 0.0
    %v358 = vmax.f32 %v281, 0.0
    %v359 = vmax.f32 %v285, 0.0
    %v360 = vmax.f32 %v287, 0.0
    %v361 = vmax.f32 %v291, 0.0
    %v362 = vmax.f32 %v293, 0.0
    %v363 = vmax.f32 %v297, 0.0
    %v364 = vmax.f32 %v299, 0.0
    %v365 = vmax.f32 %v303, 0.0
    %v366 = vmax.f32 %v305, 0.0
    %v367 = vmax.f32 %v309, 0.0
    %v368 = vmax.f32 %v311, 0.0
    %v369 = vmax.f32 %v315, 0.0
    %v370 = vmax.f32 %v317, 0.0
    %v371 = vmax.f32 %v321, 0.0
    %v372 = vmax.f32 %v323, 0.0
    %v373 = vmax.f32 %v327, 0.0
    %v374 = vmax.f32 %v329, 0.0
    %v375 = vmax.f32 %v333, 0.0
    %v376 = vmax.f32 %v335, 0.0
    %v377 = vmax.f32 %v339, 0.0
    %v378 = vmax.f32 %v341, 0.0
    %v379 = vmax.f32 %v345, 0.0
    %v380 = vmax.f32 %v347, 0.0
    %v381 = vld [vmem:[#allocation8] sm:$0xff]
    %v382 = vld [vmem:[#allocation8 + $0x8] sm:$0xff]
    %v383 = vld [vmem:[#allocation8 + $0x10] sm:$0xff]
    %v384 = vld [vmem:[#allocation8 + $0x18] sm:$0xff]
    %v385 = vld [vmem:[#allocation8 + $0x20] sm:$0xff]
    %v386 = vld [vmem:[#allocation8 + $0x28] sm:$0xff]
    %v387 = vld [vmem:[#allocation8 + $0x30] sm:$0xff]
    %v388 = vld [vmem:[#allocation8 + $0x38] sm:$0xff]
    %v389 = vld [vmem:[#allocation8 + $0x40] sm:$0xff]
    %v390 = vld [vmem:[#allocation8 + $0x48] sm:$0xff]
    %v391 = vld [vmem:[#allocation8 + $0x50] sm:$0xff]
    %v392 = vld [vmem:[#allocation8 + $0x58] sm:$0xff]
    %v393 = vld [vmem:[#allocation8 + $0x60] sm:$0xff]
    %v394 = vld [vmem:[#allocation8 + $0x68] sm:$0xff]
    %v395 = vld [vmem:[#allocation8 + $0x70] sm:$0xff]
    %v396 = vld [vmem:[#allocation8 + $0x78] sm:$0xff]
    %v397 = vld [vmem:[#allocation8 + $0x80] sm:$0xff]
    %v398 = vld [vmem:[#allocation8 + $0x88] sm:$0xff]
    %v399 = vld [vmem:[#allocation8 + $0x90] sm:$0xff]
    %v400 = vld [vmem:[#allocation8 + $0x98] sm:$0xff]
    %v401 = vld [vmem:[#allocation8 + $0xa0] sm:$0xff]
    %v402 = vld [vmem:[#allocation8 + $0xa8] sm:$0xff]
    %v403 = vld [vmem:[#allocation8 + $0xb0] sm:$0xff]
    %v404 = vld [vmem:[#allocation8 + $0xb8] sm:$0xff]
    %v405 = vld [vmem:[#allocation8 + $0xc0] sm:$0xff]
    %v406 = vld [vmem:[#allocation8 + $0xc8] sm:$0xff]
    %v407 = vld [vmem:[#allocation8 + $0xd0] sm:$0xff]
    %v408 = vld [vmem:[#allocation8 + $0xd8] sm:$0xff]
    %v409 = vld [vmem:[#allocation8 + $0xe0] sm:$0xff]
    %v410 = vld [vmem:[#allocation8 + $0xe8] sm:$0xff]
    %v411 = vld [vmem:[#allocation8 + $0xf0] sm:$0xff]
    %v412 = vld [vmem:[#allocation8 + $0xf8] sm:$0xff]
    %v413 = vld [vmem:[%s4] sm:$0x1]
    %v415 = vlaneseq
    %v416 = vshrl.u32 %v415, 7
    %v417 = vsub.s32 0, %v416
    %v418 = vrot.slane %v413, %v417
    %420 = vmatprep.subr.mxu0 0.0
    %421 = vmatpush1.msra.mxu0 %v381
    %422 = vmatprep.subr.mxu0 0.0
    %423 = vmatpush1.msra.mxu0 %v382
    %424 = vmatprep.subr.mxu0 0.0
    %425 = vmatpush1.msra.mxu0 %v383
    %426 = vmatprep.subr.mxu0 0.0
    %427 = vmatpush1.msra.mxu0 %v384
    %428 = vmatprep.subr.mxu0 0.0
    %429 = vmatpush1.msra.mxu0 %v385
    %430 = vmatprep.subr.mxu0 0.0
    %431 = vmatpush1.msra.mxu0 %v386
    %432 = vmatprep.subr.mxu0 0.0
    %433 = vmatpush1.msra.mxu0 %v387
    %434 = vmatprep.subr.mxu0 0.0
    %435 = vmatpush1.msra.mxu0 %v388
    %436 = vmatprep.subr.mxu0 0.0
    %437 = vmatpush1.msra.mxu0 %v389
    %438 = vmatprep.subr.mxu0 0.0
    %439 = vmatpush1.msra.mxu0 %v390
    %440 = vmatprep.subr.mxu0 0.0
    %441 = vmatpush1.msra.mxu0 %v391
    %442 = vmatprep.subr.mxu0 0.0
    %443 = vmatpush1.msra.mxu0 %v392
    %444 = vmatprep.subr.mxu0 0.0
    %445 = vmatpush1.msra.mxu0 %v393
    %446 = vmatprep.subr.mxu0 0.0
    %447 = vmatpush1.msra.mxu0 %v394
    %448 = vmatprep.subr.mxu0 0.0
    %449 = vmatpush1.msra.mxu0 %v395
    %450 = vmatprep.subr.mxu0 0.0
    %451 = vmatpush1.msra.mxu0 %v396
    %452 = vmatprep.subr.mxu0 0.0
    %453 = vmatpush1.msra.mxu0 %v397
    %454 = vmatprep.subr.mxu0 0.0
    %455 = vmatpush1.msra.mxu0 %v398
    %456 = vmatprep.subr.mxu0 0.0
    %457 = vmatpush1.msra.mxu0 %v399
    %458 = vmatprep.subr.mxu0 0.0
    %459 = vmatpush1.msra.mxu0 %v400
    %460 = vmatprep.subr.mxu0 0.0
    %461 = vmatpush1.msra.mxu0 %v401
    %462 = vmatprep.subr.mxu0 0.0
    %463 = vmatpush1.msra.mxu0 %v402
    %464 = vmatprep.subr.mxu0 0.0
    %465 = vmatpush1.msra.mxu0 %v403
    %466 = vmatprep.subr.mxu0 0.0
    %467 = vmatpush1.msra.mxu0 %v404
    %468 = vmatprep.subr.mxu0 0.0
    %469 = vmatpush1.msra.mxu0 %v405
    %470 = vmatprep.subr.mxu0 0.0
    %471 = vmatpush1.msra.mxu0 %v406
    %472 = vmatprep.subr.mxu0 0.0
    %473 = vmatpush1.msra.mxu0 %v407
    %474 = vmatprep.subr.mxu0 0.0
    %475 = vmatpush1.msra.mxu0 %v408
    %476 = vmatprep.subr.mxu0 0.0
    %477 = vmatpush1.msra.mxu0 %v409
    %478 = vmatprep.subr.mxu0 0.0
    %479 = vmatpush1.msra.mxu0 %v410
    %480 = vmatprep.subr.mxu0 0.0
    %481 = vmatpush1.msra.mxu0 %v411
    %482 = vmatprep.subr.mxu0 0.0
    %483 = vmatpush1.msra.mxu0 %v412
    %484 = vmatprep.mubr.f32.mxu0 %v350
    %485 = vmatmul.mubr.f32.gmra.mrb[0].mxu0 %v349
    %v486 = vpop.f32.mrb[0].mxu0
    %v487 = vadd.f32 %v418, %v486
    %v488 = vpop.f32.mrb[0].mxu0
    %489 = vmatprep.mubr.f32.mxu0 %v352
    %490 = vmatmul.mubr.f32.gmra.mrb[0].mxu0 %v351
    %v491 = vpop.f32.mrb[0].mxu0
    %v492 = vadd.f32 %v418, %v491
    %v493 = vpop.f32.mrb[0].mxu0
    %494 = vmatprep.mubr.f32.mxu0 %v354
    %495 = vmatmul.mubr.f32.gmra.mrb[0].mxu0 %v353
    %v496 = vpop.f32.mrb[0].mxu0
    %v497 = vadd.f32 %v418, %v496
    %v498 = vpop.f32.mrb[0].mxu0
    %499 = vmatprep.mubr.f32.mxu0 %v356
    %500 = vmatmul.mubr.f32.gmra.mrb[0].mxu0 %v355
    %v501 = vpop.f32.mrb[0].mxu0
    %v502 = vadd.f32 %v418, %v501
    %v503 = vpop.f32.mrb[0].mxu0
    %504 = vmatprep.mubr.f32.mxu0 %v358
    %505 = vmatmul.mubr.f32.gmra.mrb[0].mxu0 %v357
    %v506 = vpop.f32.mrb[0].mxu0
    %v507 = vadd.f32 %v418, %v506
    %v508 = vpop.f32.mrb[0].mxu0
    %509 = vmatprep.mubr.f32.mxu0 %v360
    %510 = vmatmul.mubr.f32.gmra.mrb[0].mxu0 %v359
    %v511 = vpop.f32.mrb[0].mxu0
    %v512 = vadd.f32 %v418, %v511
    %v513 = vpop.f32.mrb[0].mxu0
    %514 = vmatprep.mubr.f32.mxu0 %v362
    %515 = vmatmul.mubr.f32.gmra.mrb[0].mxu0 %v361
    %v516 = vpop.f32.mrb[0].mxu0
    %v517 = vadd.f32 %v418, %v516
    %v518 = vpop.f32.mrb[0].mxu0
    %519 = vmatprep.mubr.f32.mxu0 %v364
    %520 = vmatmul.mubr.f32.gmra.mrb[0].mxu0 %v363
    %v521 = vpop.f32.mrb[0].mxu0
    %v522 = vadd.f32 %v418, %v521
    %v523 = vpop.f32.mrb[0].mxu0
    %524 = vmatprep.mubr.f32.mxu0 %v366
    %525 = vmatmul.mubr.f32.gmra.mrb[0].mxu0 %v365
    %v526 = vpop.f32.mrb[0].mxu0
    %v527 = vadd.f32 %v418, %v526
    %v528 = vpop.f32.mrb[0].mxu0
    %529 = vmatprep.mubr.f32.mxu0 %v368
    %530 = vmatmul.mubr.f32.gmra.mrb[0].mxu0 %v367
    %v531 = vpop.f32.mrb[0].mxu0
    %v532 = vadd.f32 %v418, %v531
    %v533 = vpop.f32.mrb[0].mxu0
    %534 = vmatprep.mubr.f32.mxu0 %v370
    %535 = vmatmul.mubr.f32.gmra.mrb[0].mxu0 %v369
    %v536 = vpop.f32.mrb[0].mxu0
    %v537 = vadd.f32 %v418, %v536
    %v538 = vpop.f32.mrb[0].mxu0
    %539 = vmatprep.mubr.f32.mxu0 %v372
    %540 = vmatmul.mubr.f32.gmra.mrb[0].mxu0 %v371
    %v541 = vpop.f32.mrb[0].mxu0
    %v542 = vadd.f32 %v418, %v541
    %v543 = vpop.f32.mrb[0].mxu0
    %544 = vmatprep.mubr.f32.mxu0 %v374
    %545 = vmatmul.mubr.f32.gmra.mrb[0].mxu0 %v373
    %v546 = vpop.f32.mrb[0].mxu0
    %v547 = vadd.f32 %v418, %v546
    %v548 = vpop.f32.mrb[0].mxu0
    %549 = vmatprep.mubr.f32.mxu0 %v376
    %550 = vmatmul.mubr.f32.gmra.mrb[0].mxu0 %v375
    %v551 = vpop.f32.mrb[0].mxu0
    %v552 = vadd.f32 %v418, %v551
    %v553 = vpop.f32.mrb[0].mxu0
    %554 = vmatprep.mubr.f32.mxu0 %v378
    %555 = vmatmul.mubr.f32.gmra.mrb[0].mxu0 %v377
    %v556 = vpop.f32.mrb[0].mxu0
    %v557 = vadd.f32 %v418, %v556
    %v558 = vpop.f32.mrb[0].mxu0
    %559 = vmatprep.mubr.f32.mxu0 %v380
    %560 = vmatmul.mubr.f32.gmra.mrb[0].mxu0 %v379
    %v561 = vpop.f32.mrb[0].mxu0
    %v562 = vadd.f32 %v418, %v561
    %v563 = vpop.f32.mrb[0].mxu0
    %564 = vdwg.mxu0
    %v565 = vmax.f32 %v487, 0.0
    %v566 = vmax.f32 %v492, 0.0
    %v567 = vmax.f32 %v497, 0.0
    %v568 = vmax.f32 %v502, 0.0
    %v569 = vmax.f32 %v507, 0.0
    %v570 = vmax.f32 %v512, 0.0
    %v571 = vmax.f32 %v517, 0.0
    %v572 = vmax.f32 %v522, 0.0
    %v573 = vmax.f32 %v527, 0.0
    %v574 = vmax.f32 %v532, 0.0
    %v575 = vmax.f32 %v537, 0.0
    %v576 = vmax.f32 %v542, 0.0
    %v577 = vmax.f32 %v547, 0.0
    %v578 = vmax.f32 %v552, 0.0
    %v579 = vmax.f32 %v557, 0.0
    %v580 = vmax.f32 %v562, 0.0
    %v581 = vld [vmem:[%s5] sm:$0xff]
    %v582 = vld [vmem:[%s5 + $0x8] sm:$0xff]
    %v583 = vld [vmem:[%s5 + $0x10] sm:$0xff]
    %v584 = vld [vmem:[%s5 + $0x18] sm:$0xff]
    %v585 = vld [vmem:[%s5 + $0x20] sm:$0xff]
    %v586 = vld [vmem:[%s5 + $0x28] sm:$0xff]
    %v587 = vld [vmem:[%s5 + $0x30] sm:$0xff]
    %v588 = vld [vmem:[%s5 + $0x38] sm:$0xff]
    %v589 = vld [vmem:[%s5 + $0x40] sm:$0xff]
    %v590 = vld [vmem:[%s5 + $0x48] sm:$0xff]
    %v591 = vld [vmem:[%s5 + $0x50] sm:$0xff]
    %v592 = vld [vmem:[%s5 + $0x58] sm:$0xff]
    %v593 = vld [vmem:[%s5 + $0x60] sm:$0xff]
    %v594 = vld [vmem:[%s5 + $0x68] sm:$0xff]
    %v595 = vld [vmem:[%s5 + $0x70] sm:$0xff]
    %v596 = vld [vmem:[%s5 + $0x78] sm:$0xff]
    %v597 = vld [vmem:[%s6] sm:$0x1]
    %v599 = vlaneseq
    %v600 = vshrl.u32 %v599, 7
    %v601 = vsub.s32 0, %v600
    %v602 = vrot.slane %v597, %v601
    %604 = vmatprep.subr.mxu0 0.0
    %605 = vmatpush1.msra.mxu0 %v581
    %606 = vmatprep.subr.mxu0 0.0
    %607 = vmatpush1.msra.mxu0 %v582
    %608 = vmatprep.subr.mxu0 0.0
    %609 = vmatpush1.msra.mxu0 %v583
    %610 = vmatprep.subr.mxu0 0.0
    %611 = vmatpush1.msra.mxu0 %v584
    %612 = vmatprep.subr.mxu0 0.0
    %613 = vmatpush1.msra.mxu0 %v585
    %614 = vmatprep.subr.mxu0 0.0
    %615 = vmatpush1.msra.mxu0 %v586
    %616 = vmatprep.subr.mxu0 0.0
    %617 = vmatpush1.msra.mxu0 %v587
    %618 = vmatprep.subr.mxu0 0.0
    %619 = vmatpush1.msra.mxu0 %v588
    %620 = vmatprep.subr.mxu0 0.0
    %621 = vmatpush1.msra.mxu0 %v589
    %622 = vmatprep.subr.mxu0 0.0
    %623 = vmatpush1.msra.mxu0 %v590
    %624 = vmatprep.subr.mxu0 0.0
    %625 = vmatpush1.msra.mxu0 %v591
    %626 = vmatprep.subr.mxu0 0.0
    %627 = vmatpush1.msra.mxu0 %v592
    %628 = vmatprep.subr.mxu0 0.0
    %629 = vmatpush1.msra.mxu0 %v593
    %630 = vmatprep.subr.mxu0 0.0
    %631 = vmatpush1.msra.mxu0 %v594
    %632 = vmatprep.subr.mxu0 0.0
    %633 = vmatpush1.msra.mxu0 %v595
    %634 = vmatprep.subr.mxu0 0.0
    %635 = vmatpush1.msra.mxu0 %v596
    %636 = vmatprep.subr.mxu0 0.0
    %637 = vmatpush1.msra.mxu0 0.0
    %638 = vmatprep.subr.mxu0 0.0
    %639 = vmatpush1.msra.mxu0 0.0
    %640 = vmatprep.subr.mxu0 0.0
    %641 = vmatpush1.msra.mxu0 0.0
    %642 = vmatprep.subr.mxu0 0.0
    %643 = vmatpush1.msra.mxu0 0.0
    %644 = vmatprep.subr.mxu0 0.0
    %645 = vmatpush1.msra.mxu0 0.0
    %646 = vmatprep.subr.mxu0 0.0
    %647 = vmatpush1.msra.mxu0 0.0
    %648 = vmatprep.subr.mxu0 0.0
    %649 = vmatpush1.msra.mxu0 0.0
    %650 = vmatprep.subr.mxu0 0.0
    %651 = vmatpush1.msra.mxu0 0.0
    %652 = vmatprep.subr.mxu0 0.0
    %653 = vmatpush1.msra.mxu0 0.0
    %654 = vmatprep.subr.mxu0 0.0
    %655 = vmatpush1.msra.mxu0 0.0
    %656 = vmatprep.subr.mxu0 0.0
    %657 = vmatpush1.msra.mxu0 0.0
    %658 = vmatprep.subr.mxu0 0.0
    %659 = vmatpush1.msra.mxu0 0.0
    %660 = vmatprep.subr.mxu0 0.0
    %661 = vmatpush1.msra.mxu0 0.0
    %662 = vmatprep.subr.mxu0 0.0
    %663 = vmatpush1.msra.mxu0 0.0
    %664 = vmatprep.subr.mxu0 0.0
    %665 = vmatpush1.msra.mxu0 0.0
    %666 = vmatprep.subr.mxu0 0.0
    %667 = vmatpush1.msra.mxu0 0.0
    %668 = vmatprep.mubr.f32.mxu0 0.0
    %669 = vmatmul.mubr.f32.gmra.mrb[0].mxu0 %v565
    %v670 = vpop.f32.mrb[0].mxu0
    %v671 = vadd.f32 %v602, %v670
    %v672 = vpop.f32.mrb[0].mxu0
    %673 = vmatprep.mubr.f32.mxu0 0.0
    %674 = vmatmul.mubr.f32.gmra.mrb[0].mxu0 %v566
    %v675 = vpop.f32.mrb[0].mxu0
    %v676 = vadd.f32 %v602, %v675
    %v677 = vpop.f32.mrb[0].mxu0
    %678 = vmatprep.mubr.f32.mxu0 0.0
    %679 = vmatmul.mubr.f32.gmra.mrb[0].mxu0 %v567
    %v680 = vpop.f32.mrb[0].mxu0
    %v681 = vadd.f32 %v602, %v680
    %v682 = vpop.f32.mrb[0].mxu0
    %683 = vmatprep.mubr.f32.mxu0 0.0
    %684 = vmatmul.mubr.f32.gmra.mrb[0].mxu0 %v568
    %v685 = vpop.f32.mrb[0].mxu0
    %v686 = vadd.f32 %v602, %v685
    %v687 = vpop.f32.mrb[0].mxu0
    %688 = vmatprep.mubr.f32.mxu0 0.0
    %689 = vmatmul.mubr.f32.gmra.mrb[0].mxu0 %v569
    %v690 = vpop.f32.mrb[0].mxu0
    %v691 = vadd.f32 %v602, %v690
    %v692 = vpop.f32.mrb[0].mxu0
    %693 = vmatprep.mubr.f32.mxu0 0.0
    %694 = vmatmul.mubr.f32.gmra.mrb[0].mxu0 %v570
    %v695 = vpop.f32.mrb[0].mxu0
    %v696 = vadd.f32 %v602, %v695
    %v697 = vpop.f32.mrb[0].mxu0
    %698 = vmatprep.mubr.f32.mxu0 0.0
    %699 = vmatmul.mubr.f32.gmra.mrb[0].mxu0 %v571
    %v700 = vpop.f32.mrb[0].mxu0
    %v701 = vadd.f32 %v602, %v700
    %v702 = vpop.f32.mrb[0].mxu0
    %703 = vmatprep.mubr.f32.mxu0 0.0
    %704 = vmatmul.mubr.f32.gmra.mrb[0].mxu0 %v572
    %v705 = vpop.f32.mrb[0].mxu0
    %v706 = vadd.f32 %v602, %v705
    %v707 = vpop.f32.mrb[0].mxu0
    %708 = vmatprep.mubr.f32.mxu0 0.0
    %709 = vmatmul.mubr.f32.gmra.mrb[0].mxu0 %v573
    %v710 = vpop.f32.mrb[0].mxu0
    %v711 = vadd.f32 %v602, %v710
    %v712 = vpop.f32.mrb[0].mxu0
    %713 = vmatprep.mubr.f32.mxu0 0.0
    %714 = vmatmul.mubr.f32.gmra.mrb[0].mxu0 %v574
    %v715 = vpop.f32.mrb[0].mxu0
    %v716 = vadd.f32 %v602, %v715
    %v717 = vpop.f32.mrb[0].mxu0
    %718 = vmatprep.mubr.f32.mxu0 0.0
    %719 = vmatmul.mubr.f32.gmra.mrb[0].mxu0 %v575
    %v720 = vpop.f32.mrb[0].mxu0
    %v721 = vadd.f32 %v602, %v720
    %v722 = vpop.f32.mrb[0].mxu0
    %723 = vmatprep.mubr.f32.mxu0 0.0
    %724 = vmatmul.mubr.f32.gmra.mrb[0].mxu0 %v576
    %v725 = vpop.f32.mrb[0].mxu0
    %v726 = vadd.f32 %v602, %v725
    %v727 = vpop.f32.mrb[0].mxu0
    %728 = vmatprep.mubr.f32.mxu0 0.0
    %729 = vmatmul.mubr.f32.gmra.mrb[0].mxu0 %v577
    %v730 = vpop.f32.mrb[0].mxu0
    %v731 = vadd.f32 %v602, %v730
    %v732 = vpop.f32.mrb[0].mxu0
    %733 = vmatprep.mubr.f32.mxu0 0.0
    %734 = vmatmul.mubr.f32.gmra.mrb[0].mxu0 %v578
    %v735 = vpop.f32.mrb[0].mxu0
    %v736 = vadd.f32 %v602, %v735
    %v737 = vpop.f32.mrb[0].mxu0
    %738 = vmatprep.mubr.f32.mxu0 0.0
    %739 = vmatmul.mubr.f32.gmra.mrb[0].mxu0 %v579
    %v740 = vpop.f32.mrb[0].mxu0
    %v741 = vadd.f32 %v602, %v740
    %v742 = vpop.f32.mrb[0].mxu0
    %743 = vmatprep.mubr.f32.mxu0 0.0
    %744 = vmatmul.mubr.f32.gmra.mrb[0].mxu0 %v580
    %v745 = vpop.f32.mrb[0].mxu0
    %v746 = vadd.f32 %v602, %v745
    %v747 = vpop.f32.mrb[0].mxu0
    %748 = vdwg.mxu0
    %v749 = vmax.f32 %v671, 0.0
    %v750 = vmax.f32 %v676, 0.0
    %v751 = vmax.f32 %v681, 0.0
    %v752 = vmax.f32 %v686, 0.0
    %v753 = vmax.f32 %v691, 0.0
    %v754 = vmax.f32 %v696, 0.0
    %v755 = vmax.f32 %v701, 0.0
    %v756 = vmax.f32 %v706, 0.0
    %v757 = vmax.f32 %v711, 0.0
    %v758 = vmax.f32 %v716, 0.0
    %v759 = vmax.f32 %v721, 0.0
    %v760 = vmax.f32 %v726, 0.0
    %v761 = vmax.f32 %v731, 0.0
    %v762 = vmax.f32 %v736, 0.0
    %v763 = vmax.f32 %v741, 0.0
    %v764 = vmax.f32 %v746, 0.0
    %vm765 = vcmask 523264
    %v766 = vsel %vm765, %v749, -inf
    %v767 = vrot.slane %v766, 4
    %v768 = vmax.f32 %v766, %v767
    %v769 = vrot.slane %v768, 2
    %v770 = vmax.f32 %v768, %v769
    %v771 = vrot.slane %v770, 1
    %v772 = vmax.f32 %v770, %v771
    %v773 = vsel %vm765, %v750, -inf
    %v774 = vrot.slane %v773, 4
    %v775 = vmax.f32 %v773, %v774
    %v776 = vrot.slane %v775, 2
    %v777 = vmax.f32 %v775, %v776
    %v778 = vrot.slane %v777, 1
    %v779 = vmax.f32 %v777, %v778
    %v780 = vsel %vm765, %v751, -inf
    %v781 = vrot.slane %v780, 4
    %v782 = vmax.f32 %v780, %v781
    %v783 = vrot.slane %v782, 2
    %v784 = vmax.f32 %v782, %v783
    %v785 = vrot.slane %v784, 1
    %v786 = vmax.f32 %v784, %v785
    %v787 = vsel %vm765, %v752, -inf
    %v788 = vrot.slane %v787, 4
    %v789 = vmax.f32 %v787, %v788
    %v790 = vrot.slane %v789, 2
    %v791 = vmax.f32 %v789, %v790
    %v792 = vrot.slane %v791, 1
    %v793 = vmax.f32 %v791, %v792
    %v794 = vsel %vm765, %v753, -inf
    %v795 = vrot.slane %v794, 4
    %v796 = vmax.f32 %v794, %v795
    %v797 = vrot.slane %v796, 2
    %v798 = vmax.f32 %v796, %v797
    %v799 = vrot.slane %v798, 1
    %v800 = vmax.f32 %v798, %v799
    %v801 = vsel %vm765, %v754, -inf
    %v802 = vrot.slane %v801, 4
    %v803 = vmax.f32 %v801, %v802
    %v804 = vrot.slane %v803, 2
    %v805 = vmax.f32 %v803, %v804
    %v806 = vrot.slane %v805, 1
    %v807 = vmax.f32 %v805, %v806
    %v808 = vsel %vm765, %v755, -inf
    %v809 = vrot.slane %v808, 4
    %v810 = vmax.f32 %v808, %v809
    %v811 = vrot.slane %v810, 2
    %v812 = vmax.f32 %v810, %v811
    %v813 = vrot.slane %v812, 1
    %v814 = vmax.f32 %v812, %v813
    %v815 = vsel %vm765, %v756, -inf
    %v816 = vrot.slane %v815, 4
    %v817 = vmax.f32 %v815, %v816
    %v818 = vrot.slane %v817, 2
    %v819 = vmax.f32 %v817, %v818
    %v820 = vrot.slane %v819, 1
    %v821 = vmax.f32 %v819, %v820
    %v822 = vsel %vm765, %v757, -inf
    %v823 = vrot.slane %v822, 4
    %v824 = vmax.f32 %v822, %v823
    %v825 = vrot.slane %v824, 2
    %v826 = vmax.f32 %v824, %v825
    %v827 = vrot.slane %v826, 1
    %v828 = vmax.f32 %v826, %v827
    %v829 = vsel %vm765, %v758, -inf
    %v830 = vrot.slane %v829, 4
    %v831 = vmax.f32 %v829, %v830
    %v832 = vrot.slane %v831, 2
    %v833 = vmax.f32 %v831, %v832
    %v834 = vrot.slane %v833, 1
    %v835 = vmax.f32 %v833, %v834
    %v836 = vsel %vm765, %v759, -inf
    %v837 = vrot.slane %v836, 4
    %v838 = vmax.f32 %v836, %v837
    %v839 = vrot.slane %v838, 2
    %v840 = vmax.f32 %v838, %v839
    %v841 = vrot.slane %v840, 1
    %v842 = vmax.f32 %v840, %v841
    %v843 = vsel %vm765, %v760, -inf
    %v844 = vrot.slane %v843, 4
    %v845 = vmax.f32 %v843, %v844
    %v846 = vrot.slane %v845, 2
    %v847 = vmax.f32 %v845, %v846
    %v848 = vrot.slane %v847, 1
    %v849 = vmax.f32 %v847, %v848
    %v850 = vsel %vm765, %v761, -inf
    %v851 = vrot.slane %v850, 4
    %v852 = vmax.f32 %v850, %v851
    %v853 = vrot.slane %v852, 2
    %v854 = vmax.f32 %v852, %v853
    %v855 = vrot.slane %v854, 1
    %v856 = vmax.f32 %v854, %v855
    %v857 = vsel %vm765, %v762, -inf
    %v858 = vrot.slane %v857, 4
    %v859 = vmax.f32 %v857, %v858
    %v860 = vrot.slane %v859, 2
    %v861 = vmax.f32 %v859, %v860
    %v862 = vrot.slane %v861, 1
    %v863 = vmax.f32 %v861, %v862
    %v864 = vsel %vm765, %v763, -inf
    %v865 = vrot.slane %v864, 4
    %v866 = vmax.f32 %v864, %v865
    %v867 = vrot.slane %v866, 2
    %v868 = vmax.f32 %v866, %v867
    %v869 = vrot.slane %v868, 1
    %v870 = vmax.f32 %v868, %v869
    %v871 = vsel %vm765, %v764, -inf
    %v872 = vrot.slane %v871, 4
    %v873 = vmax.f32 %v871, %v872
    %v874 = vrot.slane %v873, 2
    %v875 = vmax.f32 %v873, %v874
    %v876 = vrot.slane %v875, 1
    %v877 = vmax.f32 %v875, %v876
    %s878 = smul.u32 0, 16
    %vm895 = vcmask 1041409
    %v896 = vsel %vm895, %v779, %v772
    %vm897 = vcmask 1042434
    %v898 = vsel %vm897, %v786, %v896
    %vm899 = vcmask 1043459
    %v900 = vsel %vm899, %v793, %v898
    %vm901 = vcmask 1044484
    %v902 = vsel %vm901, %v800, %v900
    %vm903 = vcmask 1045509
    %v904 = vsel %vm903, %v807, %v902
    %vm905 = vcmask 1046534
    %v906 = vsel %vm905, %v814, %v904
    %vm907 = vcmask 1047559
    %v908 = vsel %vm907, %v821, %v906
    %v909 = vsel %vm895, %v835, %v828
    %v910 = vsel %vm897, %v842, %v909
    %v911 = vsel %vm899, %v849, %v910
    %v912 = vsel %vm901, %v856, %v911
    %v913 = vsel %vm903, %v863, %v912
    %v914 = vsel %vm905, %v870, %v913
    %v915 = vsel %vm907, %v877, %v914
    %v918 = vsel %vm765, %v908, 0.0
    %v919 = vsel %vm765, %v915, 0.0
    %s920 = scalar_lea.vmem [#allocation9], %s878
    %921 = vst [vmem:[%s920] sm:$0xff] %v918
    %922 = vst [vmem:[%s920 + $0x8] sm:$0xff] %v919
    %p923 = scmp.eq.s32.totalorder 0, 0
    // Predicated region
    $region54: #{tpu_custom_call.1} parent=1 // pred_check
      %p924 = pneg %p923
    $region55: #{tpu_custom_call.1} parent=1 // pred_check_branch
      %926 = sbr.rel (%p924) target = $region57
    $region56: #{tpu_custom_call.1} parent=1 // pred_region
      %v927 = vld [vmem:[#allocation9] sm:$0xff]
      %v928 = vld [vmem:[#allocation9 + $0x8] sm:$0xff]
      %v929 = vld [vmem:[%s8] sm:$0xff]
      %v930 = vld [vmem:[%s8 + $0x8] sm:$0xff]
      %v931 = vld [vmem:[%s8 + $0x10] sm:$0xff]
      %v932 = vld [vmem:[%s8 + $0x18] sm:$0xff]
      %v933 = vld [vmem:[%s8 + $0x20] sm:$0xff]
      %v934 = vld [vmem:[%s8 + $0x28] sm:$0xff]
      %v935 = vld [vmem:[%s8 + $0x30] sm:$0xff]
      %v936 = vld [vmem:[%s8 + $0x38] sm:$0xff]
      %v938 = vsel %vm765, %v927, 0
      %v941 = vsel %vm765, %v928, 0
      %943 = vmatprep.subr.mxu0 0.0
      %944 = vmatpush1.msra.mxu0 %v929
      %945 = vmatprep.subr.mxu0 0.0
      %946 = vmatpush1.msra.mxu0 %v930
      %947 = vmatprep.subr.mxu0 0.0
      %948 = vmatpush1.msra.mxu0 %v931
      %949 = vmatprep.subr.mxu0 0.0
      %950 = vmatpush1.msra.mxu0 %v932
      %951 = vmatprep.subr.mxu0 0.0
      %952 = vmatpush1.msra.mxu0 %v933
      %953 = vmatprep.subr.mxu0 0.0
      %954 = vmatpush1.msra.mxu0 %v934
      %955 = vmatprep.subr.mxu0 0.0
      %956 = vmatpush1.msra.mxu0 %v935
      %957 = vmatprep.subr.mxu0 0.0
      %958 = vmatpush1.msra.mxu0 %v936
      %959 = vmatprep.subr.mxu0 0.0
      %960 = vmatpush1.msra.mxu0 0.0
      %961 = vmatprep.subr.mxu0 0.0
      %962 = vmatpush1.msra.mxu0 0.0
      %963 = vmatprep.subr.mxu0 0.0
      %964 = vmatpush1.msra.mxu0 0.0
      %965 = vmatprep.subr.mxu0 0.0
      %966 = vmatpush1.msra.mxu0 0.0
      %967 = vmatprep.subr.mxu0 0.0
      %968 = vmatpush1.msra.mxu0 0.0
      %969 = vmatprep.subr.mxu0 0.0
      %970 = vmatpush1.msra.mxu0 0.0
      %971 = vmatprep.subr.mxu0 0.0
      %972 = vmatpush1.msra.mxu0 0.0
      %973 = vmatprep.subr.mxu0 0.0
      %974 = vmatpush1.msra.mxu0 0.0
      %975 = vmatprep.subr.mxu0 0.0
      %976 = vmatpush1.msra.mxu0 0.0
      %977 = vmatprep.subr.mxu0 0.0
      %978 = vmatpush1.msra.mxu0 0.0
      %979 = vmatprep.subr.mxu0 0.0
      %980 = vmatpush1.msra.mxu0 0.0
      %981 = vmatprep.subr.mxu0 0.0
      %982 = vmatpush1.msra.mxu0 0.0
      %983 = vmatprep.subr.mxu0 0.0
      %984 = vmatpush1.msra.mxu0 0.0
      %985 = vmatprep.subr.mxu0 0.0
      %986 = vmatpush1.msra.mxu0 0.0
      %987 = vmatprep.subr.mxu0 0.0
      %988 = vmatpush1.msra.mxu0 0.0
      %989 = vmatprep.subr.mxu0 0.0
      %990 = vmatpush1.msra.mxu0 0.0
      %991 = vmatprep.subr.mxu0 0.0
      %992 = vmatpush1.msra.mxu0 0.0
      %993 = vmatprep.subr.mxu0 0.0
      %994 = vmatpush1.msra.mxu0 0.0
      %995 = vmatprep.subr.mxu0 0.0
      %996 = vmatpush1.msra.mxu0 0.0
      %997 = vmatprep.subr.mxu0 0.0
      %998 = vmatpush1.msra.mxu0 0.0
      %999 = vmatprep.subr.mxu0 0.0
      %1000 = vmatpush1.msra.mxu0 0.0
      %1001 = vmatprep.subr.mxu0 0.0
      %1002 = vmatpush1.msra.mxu0 0.0
      %1003 = vmatprep.subr.mxu0 0.0
      %1004 = vmatpush1.msra.mxu0 0.0
      %1005 = vmatprep.subr.mxu0 0.0
      %1006 = vmatpush1.msra.mxu0 0.0
      %1007 = vmatprep.mubr.f32.mxu0 0.0
      %1008 = vmatmul.mubr.f32.gmra.mrb[0].mxu0 %v938
      %v1009 = vpop.f32.mrb[0].mxu0
      %v1010 = vadd.f32 0.0, %v1009
      %v1011 = vpop.f32.mrb[0].mxu0
      %1012 = vmatprep.mubr.f32.mxu0 0.0
      %1013 = vmatmul.mubr.f32.gmra.mrb[0].mxu0 %v941
      %v1014 = vpop.f32.mrb[0].mxu0
      %v1015 = vadd.f32 0.0, %v1014
      %v1016 = vpop.f32.mrb[0].mxu0
      %1017 = vdwg.mxu0
      %v1018 = vld [vmem:[%s7] sm:$0xff]
      %v1019 = vld [vmem:[%s7 + $0x8] sm:$0xff]
      %v1020 = vld [vmem:[#allocation2] sm:$0x1]
      %v1022 = vlaneseq
      %v1023 = vshrl.u32 %v1022, 7
      %v1024 = vsub.s32 0, %v1023
      %v1025 = vrot.slane %v1020, %v1024
      %vm1027 = vcmask 130048
      %v1029 = vsel %vm1027, %v1018, 0
      %v1032 = vsel %vm1027, %v1019, 0
      %1034 = vmatprep.subr.mxu0 0.0
      %1035 = vmatpush1.msra.mxu0 %v1010
      %1036 = vmatprep.subr.mxu0 0.0
      %1037 = vmatpush1.msra.mxu0 %v1015
      %1038 = vmatprep.subr.mxu0 0.0
      %1039 = vmatpush1.msra.mxu0 0.0
      %1040 = vmatprep.subr.mxu0 0.0
      %1041 = vmatpush1.msra.mxu0 0.0
      %1042 = vmatprep.subr.mxu0 0.0
      %1043 = vmatpush1.msra.mxu0 0.0
      %1044 = vmatprep.subr.mxu0 0.0
      %1045 = vmatpush1.msra.mxu0 0.0
      %1046 = vmatprep.subr.mxu0 0.0
      %1047 = vmatpush1.msra.mxu0 0.0
      %1048 = vmatprep.subr.mxu0 0.0
      %1049 = vmatpush1.msra.mxu0 0.0
      %1050 = vmatprep.subr.mxu0 0.0
      %1051 = vmatpush1.msra.mxu0 0.0
      %1052 = vmatprep.subr.mxu0 0.0
      %1053 = vmatpush1.msra.mxu0 0.0
      %1054 = vmatprep.subr.mxu0 0.0
      %1055 = vmatpush1.msra.mxu0 0.0
      %1056 = vmatprep.subr.mxu0 0.0
      %1057 = vmatpush1.msra.mxu0 0.0
      %1058 = vmatprep.subr.mxu0 0.0
      %1059 = vmatpush1.msra.mxu0 0.0
      %1060 = vmatprep.subr.mxu0 0.0
      %1061 = vmatpush1.msra.mxu0 0.0
      %1062 = vmatprep.subr.mxu0 0.0
      %1063 = vmatpush1.msra.mxu0 0.0
      %1064 = vmatprep.subr.mxu0 0.0
      %1065 = vmatpush1.msra.mxu0 0.0
      %1066 = vmatprep.subr.mxu0 0.0
      %1067 = vmatpush1.msra.mxu0 0.0
      %1068 = vmatprep.subr.mxu0 0.0
      %1069 = vmatpush1.msra.mxu0 0.0
      %1070 = vmatprep.subr.mxu0 0.0
      %1071 = vmatpush1.msra.mxu0 0.0
      %1072 = vmatprep.subr.mxu0 0.0
      %1073 = vmatpush1.msra.mxu0 0.0
      %1074 = vmatprep.subr.mxu0 0.0
      %1075 = vmatpush1.msra.mxu0 0.0
      %1076 = vmatprep.subr.mxu0 0.0
      %1077 = vmatpush1.msra.mxu0 0.0
      %1078 = vmatprep.subr.mxu0 0.0
      %1079 = vmatpush1.msra.mxu0 0.0
      %1080 = vmatprep.subr.mxu0 0.0
      %1081 = vmatpush1.msra.mxu0 0.0
      %1082 = vmatprep.subr.mxu0 0.0
      %1083 = vmatpush1.msra.mxu0 0.0
      %1084 = vmatprep.subr.mxu0 0.0
      %1085 = vmatpush1.msra.mxu0 0.0
      %1086 = vmatprep.subr.mxu0 0.0
      %1087 = vmatpush1.msra.mxu0 0.0
      %1088 = vmatprep.subr.mxu0 0.0
      %1089 = vmatpush1.msra.mxu0 0.0
      %1090 = vmatprep.subr.mxu0 0.0
      %1091 = vmatpush1.msra.mxu0 0.0
      %1092 = vmatprep.subr.mxu0 0.0
      %1093 = vmatpush1.msra.mxu0 0.0
      %1094 = vmatprep.subr.mxu0 0.0
      %1095 = vmatpush1.msra.mxu0 0.0
      %1096 = vmatprep.subr.mxu0 0.0
      %1097 = vmatpush1.msra.mxu0 0.0
      %1098 = vmatprep.mubr.f32.mxu0 0.0
      %1099 = vmatmul.mubr.f32.gmra.mrb[0].mxu0 %v1029
      %v1100 = vpop.f32.mrb[0].mxu0
      %v1101 = vadd.f32 %v1025, %v1100
      %v1102 = vpop.f32.mrb[0].mxu0
      %1103 = vmatprep.mubr.f32.mxu0 0.0
      %1104 = vmatmul.mubr.f32.gmra.mrb[0].mxu0 %v1032
      %v1105 = vpop.f32.mrb[0].mxu0
      %v1106 = vadd.f32 %v1025, %v1105
      %v1107 = vpop.f32.mrb[0].mxu0
      %1108 = vdwg.mxu0
      %v1109 = vxor.u32 %v1101, 2147483648
      %v1110 = vxor.u32 %v1106, 2147483648
      %v1111 = vmul.f32 %v1109, 1.442695
      %v1112 = vpow.pop %v1111
      %v1113 = vmul.f32 %v1110, 1.442695
      %v1114 = vpow.pop %v1113
      %v1115 = vadd.f32 %v1112, 1.0
      %v1116 = vadd.f32 %v1114, 1.0
      %v1117 = vrcp.pop %v1115
      %v1118 = vmul.f32 1.0, %v1117
      %v1119 = vrcp.pop %v1116
      %v1120 = vmul.f32 1.0, %v1119
      %1122 = vset.pattern.permute.xlu0 0
      %1123 = vperm.xlu0 %1122, %v1118
      %v1124 = vpop.permute.xlu0 %1123
      %1127 = vset.pattern.permute.xlu0 0
      %1128 = vperm.xlu0 %1127, %v1120
      %v1129 = vpop.permute.xlu0 %1128
      %1131 = vst [vmem:[#allocation10] sm:$0xff] %v1124
      %1132 = vst [vmem:[#allocation10 + $0x8] sm:$0xff] %v1129
    $region57: #{tpu_custom_call.1} parent=1 // pred_fallthru
      _
    // Predicated region
    $region58: #{tpu_custom_call.1} parent=1 // pred_check
      _
    $region59: #{tpu_custom_call.1} parent=1 // pred_check_branch
      %1134 = sbr.rel (0) target = $region61
    $region60: #{tpu_custom_call.1} parent=1 // pred_region
      %s1136 = ssub.s32 256, 256
      %1137 = vsyncadd [#allocation5], %s1136
      %s1138 = sshll.u32 [#allocation9], 4
      %s1139 = int_to_ptr.vmem [resolvable:$true] %s1138
      %1144 = dma.vmem_to_hbm [thread:$0]  %s1139, 256, %s10, [#allocation5], 128, 128, 8
    $region61: #{tpu_custom_call.1} parent=1 // pred_fallthru
      _
    // Predicated region
    $region62: #{tpu_custom_call.1} parent=1 // pred_check
      _
    $region63: #{tpu_custom_call.1} parent=1 // pred_check_branch
      %1146 = sbr.rel (0) target = $region65
    $region64: #{tpu_custom_call.1} parent=1 // pred_region
      %s1148 = ssub.s32 256, 256
      %1149 = vsyncadd [#allocation11], %s1148
      %s1150 = sshll.u32 [#allocation10], 4
      %s1151 = int_to_ptr.vmem [resolvable:$true] %s1150
      %1156 = dma.vmem_to_hbm [thread:$0]  %s1151, 256, %s11, [#allocation11], 128, 128, 8
    $region65: #{tpu_custom_call.1} parent=1 // pred_fallthru
      _
    // Predicated region
    $region66: #{tpu_custom_call.1} parent=1 // pred_check
      _
    $region67: #{tpu_custom_call.1} parent=1 // pred_check_branch
      %1158 = sbr.rel (0) target = $region69
    $region68: #{tpu_custom_call.1} parent=1 // pred_region
      %1159 = dma.done [#allocation5], 256
    $region69: #{tpu_custom_call.1} parent=1 // pred_fallthru
      _
    // Predicated region
    $region70: #{tpu_custom_call.1} parent=1 // pred_check
      _
    $region71: #{tpu_custom_call.1} parent=1 // pred_check_branch
      %1161 = sbr.rel (0) target = $region73
    $region72: #{tpu_custom_call.1} parent=1 // pred_region
      %1162 = dma.done [#allocation11], 256
    $region73: #{tpu_custom_call.1} parent=1 // pred_fallthru
      _
    %1163 = vsyncpa [#allocation4], 1
    %1164 = vsyncpa [#allocation7], 1
    %1165 = vsyncpa [#allocation5], 1
    %1166 = vsyncpa [#allocation11], 1

</llo_original>
